<compile_context>
chip_gen: v7x
topology: tpu7x:2x2x1
jax: 0.10.0
libtpu: 0.0.40
codegen_flags: <defaults>
</compile_context>

<pallas_src>
import functools

import jax
import jax.numpy as jnp
from jax.experimental import pallas as pl
from jax.experimental.pallas import tpu as pltpu


def _round_up(x, m):
    return ((x + m - 1) // m) * m


def _choose_batch_tile(B, L, E, F, C, filter_size, budget_bytes=8 << 20):
    """Largest batch tile (multiple of 8) whose working set fits a conservative
    VMEM budget (kept well under the scoped default on v5e/v6e and the 64 MiB
    physical VMEM of v7x)."""
    del filter_size
    per_row = (
        2 * (2 * L * E * 2)        # double-buffered bf16 input tile (x & y)
        + 2 * L * F * (4 + 2)      # h (f32) + hb (bf16)
        + 2 * L * C * 4 * 2        # per-dt matmul result + accumulator (f32)
    )
    tb = max(8, (budget_bytes // max(per_row, 1)) // 8 * 8)
    return int(min(tb, _round_up(B, 8)))


def _qa_cnn_kernel(filter_size, num_features,
                   emb_ref, fc_w_ref, fc_b_ref, conv_w_ref, conv_b_ref,
                   out_ref):
    F = num_features
    emb = emb_ref[...]                        # (2, TB, L, E) bf16
    _, TB, L, E = emb.shape
    C = conv_w_ref.shape[1]
    T = L - filter_size + 1

    fc_w = fc_w_ref[...]                      # (E, F)  bf16
    fc_b = fc_b_ref[...]                      # (1, F)  f32
    conv_w = conv_w_ref[...]                  # (FS*F, C) bf16
    conv_b = conv_b_ref[...]                  # (1, C)  f32

    # fc + tanh: single 2-D MXU matmul over both branches and all positions.
    x2d = emb.reshape(2 * TB * L, E)
    h = jnp.tanh(
        jnp.dot(x2d, fc_w, preferred_element_type=jnp.float32) + fc_b
    )                                          # (2*TB*L, F) f32
    hb = h.astype(jnp.bfloat16)

    # Conv2d(1, C, (FS, F)) over (B,1,L,F):
    #   z[b,t,c] = sum_dt h[b,t+dt,:] @ W[dt] + bias[c]
    # Each dt term is computed on the full sequence as a 2-D matmul (MXU stays
    # full), then shifted/added on the lane-dense C axis.
    z = None
    for dt in range(filter_size):
        w_dt = conv_w[dt * F:(dt + 1) * F, :]                       # (F, C)
        g = jnp.dot(hb, w_dt, preferred_element_type=jnp.float32)   # (2TB*L, C)
        g = g.reshape(2 * TB, L, C)[:, dt:dt + T, :]                # (2TB, T, C)
        z = g if z is None else z + g
    z = z + conv_b                                                  # (2TB, T, C)

    # max_pool1d over the whole time axis, then tanh.
    pooled = jnp.tanh(jnp.max(z, axis=1))                           # (2TB, C)
    px = pooled[:TB]
    py = pooled[TB:]

    # torch.nn.CosineSimilarity(dim=1, eps=1e-8):
    #   num / (max(||x||, eps) * max(||y||, eps))
    # computed with rsqrt on the clamped squared norms (EUP slot).
    eps = 1e-8
    num = jnp.sum(px * py, axis=-1, keepdims=True)                  # (TB, 1)
    nx2 = jnp.sum(px * px, axis=-1, keepdims=True)
    ny2 = jnp.sum(py * py, axis=-1, keepdims=True)
    inv = (jax.lax.rsqrt(jnp.maximum(nx2, eps * eps)) *
           jax.lax.rsqrt(jnp.maximum(ny2, eps * eps)))
    out_ref[...] = num * inv


def answer_selection_forward(x_tokens, y_tokens, params, filter_size, *, tb=None):
    """x_tokens, y_tokens: int32 (B, L) token ids.  Returns (B, 1) f32."""
    emb_table = params['emb'].astype(jnp.bfloat16)   # bf16 fused into the gather
    fc_w = params['fc_w'].astype(jnp.bfloat16)       # (E, F)
    fc_b = params['fc_b'].astype(jnp.float32)        # (1, F)
    conv_w = params['conv_w'].astype(jnp.bfloat16)   # (FS*F, C)
    conv_b = params['conv_b'].astype(jnp.float32)    # (1, C)

    B, L = x_tokens.shape
    E = emb_table.shape[1]
    F = fc_w.shape[1]
    C = conv_w.shape[1]

    # Gather both branches at once: (2, B, L, E) bf16.
    tokens = jnp.stack([x_tokens, y_tokens], axis=0)
    emb = jnp.take(emb_table, tokens, axis=0)

    if tb is None:
        tb = _choose_batch_tile(B, L, E, F, C, filter_size)
    tb = max(8, (int(tb) // 8) * 8)
    Bp = _round_up(B, tb)
    if Bp != B:
        emb = jnp.pad(emb, ((0, 0), (0, Bp - B), (0, 0), (0, 0)))

    grid = (Bp // tb,)
    kernel = functools.partial(_qa_cnn_kernel, filter_size, F)

    out = pl.pallas_call(
        kernel,
        out_shape=jax.ShapeDtypeStruct((Bp, 1), jnp.float32),
        grid=grid,
        in_specs=[
            pl.BlockSpec((2, tb, L, E), lambda i: (0, i, 0, 0)),   # streamed tile
            pl.BlockSpec((E, F), lambda i: (0, 0)),                # resident weights
            pl.BlockSpec((1, F), lambda i: (0, 0)),
            pl.BlockSpec((filter_size * F, C), lambda i: (0, 0)),
            pl.BlockSpec((1, C), lambda i: (0, 0)),
        ],
        out_specs=pl.BlockSpec((tb, 1), lambda i: (i, 0)),
        compiler_params=pltpu.CompilerParams(
            dimension_semantics=("parallel",),
            # Explicit scoped-VMEM limit with headroom on the 64 MiB v7x part.
            vmem_limit_bytes=48 * 1024 * 1024,
        ),
    )(emb, fc_w, fc_b, conv_w, conv_b)
    return out[:B]


def init_params(key, vocab, embed_dim, num_features, num_filters,
                filter_size, pad_idx=0):
    k1, k2, k3, k4, k5 = jax.random.split(key, 5)
    emb = 0.1 * jax.random.normal(k1, (vocab, embed_dim), jnp.float32)
    emb = emb.at[pad_idx].set(0.0)                       # padding_idx row = 0
    fc_w = jax.random.normal(k2, (embed_dim, num_features), jnp.float32) \
        / jnp.sqrt(float(embed_dim))
    fc_b = 0.01 * jax.random.normal(k3, (1, num_features), jnp.float32)
    conv_w = jax.random.normal(
        k4, (filter_size * num_features, num_filters), jnp.float32) \
        / jnp.sqrt(float(filter_size * num_features))
    conv_b = 0.01 * jax.random.normal(k5, (1, num_filters), jnp.float32)
    return dict(emb=emb, fc_w=fc_w, fc_b=fc_b, conv_w=conv_w, conv_b=conv_b)


def reference_forward(x_tokens, y_tokens, params, filter_size):
    """Pure-JAX reference mirroring the kernel's bf16/f32 math for validation."""
    emb_table = params['emb'].astype(jnp.bfloat16)
    fc_w = params['fc_w'].astype(jnp.bfloat16)
    fc_b = params['fc_b'].astype(jnp.float32)
    conv_w = params['conv_w'].astype(jnp.bfloat16)
    conv_b = params['conv_b'].astype(jnp.float32)
    F = fc_w.shape[1]

    def branch(tokens):
        e = jnp.take(emb_table, tokens, axis=0)                       # (B,L,E)
        h = jnp.tanh(
            jnp.einsum('ble,ef->blf', e, fc_w,
                       preferred_element_type=jnp.float32) + fc_b)    # (B,L,F)
        hb = h.astype(jnp.bfloat16)
        L = h.shape[1]
        T = L - filter_size + 1
        z = None
        for dt in range(filter_size):
            w_dt = conv_w[dt * F:(dt + 1) * F, :]
            g = jnp.einsum('blf,fc->blc', hb, w_dt,
                           preferred_element_type=jnp.float32)[:, dt:dt + T, :]
            z = g if z is None else z + g
        z = z + conv_b                                                # (B,T,C)
        return jnp.tanh(jnp.max(z, axis=1))                           # (B,C)

    px, py = branch(x_tokens), branch(y_tokens)
    eps = 1e-8
    num = jnp.sum(px * py, axis=-1, keepdims=True)
    nx = jnp.sqrt(jnp.sum(px * px, axis=-1, keepdims=True))
    ny = jnp.sqrt(jnp.sum(py * py, axis=-1, keepdims=True))
    return num / (jnp.maximum(nx, eps) * jnp.maximum(ny, eps))


if __name__ == "__main__":
    VOCAB, EMBED_DIM = 50, 32
    NUM_FEATURES, NUM_FILTERS, FILTER_SIZE = 32, 128, 2
    B, L = 16, 8

    key = jax.random.PRNGKey(0)
    kp, kx, ky = jax.random.split(key, 3)
    params = init_params(kp, VOCAB, EMBED_DIM, NUM_FEATURES,
                         NUM_FILTERS, FILTER_SIZE)
    x = jax.random.randint(kx, (B, L), 0, VOCAB, dtype=jnp.int32)
    y = jax.random.randint(ky, (B, L), 0, VOCAB, dtype=jnp.int32)

    # tb=8 -> 2 pipelined grid steps over the batch.
    out = answer_selection_forward(x, y, params, FILTER_SIZE, tb=8)
    out = jax.block_until_ready(out)

    ref = reference_forward(x, y, params, FILTER_SIZE)
    assert out.shape == (B, 1), out.shape
    assert jnp.allclose(out, ref, rtol=2e-3, atol=2e-3), (out, ref)
    print("KERNEL_OK")
</pallas_src>

<mosaic_0001>
module attributes {stable_mosaic.version = 11 : i64} {
  func.func @_qa_cnn_kernel(%arg0: i32, %arg1: memref<2x8x8x32xbf16, #tpu.memory_space<vmem>>, %arg2: memref<32x32xbf16, #tpu.memory_space<vmem>>, %arg3: memref<1x32xf32, #tpu.memory_space<vmem>>, %arg4: memref<64x128xbf16, #tpu.memory_space<vmem>>, %arg5: memref<1x128xf32, #tpu.memory_space<vmem>>, %arg6: memref<8x1xf32, #tpu.memory_space<vmem>>) attributes {dimension_semantics = [#tpu.dimension_semantics<parallel>], iteration_bounds = array<i64: 2>, scalar_prefetch = 0 : i64, scratch_operands = 0 : i64, tpu.core_type = #tpu.core_type<tc>, window_params = [{transform_indices = @transform_0, window_bounds = array<i64: 2, 8, 8, 32>}, {pipeline_mode = #tpu.pipeline_mode<synchronous>, transform_indices = @transform_1, window_bounds = array<i64: 32, 32>}, {pipeline_mode = #tpu.pipeline_mode<synchronous>, transform_indices = @transform_2, window_bounds = array<i64: 1, 32>}, {pipeline_mode = #tpu.pipeline_mode<synchronous>, transform_indices = @transform_3, window_bounds = array<i64: 64, 128>}, {pipeline_mode = #tpu.pipeline_mode<synchronous>, transform_indices = @transform_4, window_bounds = array<i64: 1, 128>}, {transform_indices = @transform_5, window_bounds = array<i64: 8, 1>}]} {
    %c0 = arith.constant 0 : index
    %c0_0 = arith.constant 0 : index
    %c0_1 = arith.constant 0 : index
    %c0_2 = arith.constant 0 : index
    %0 = vector.load %arg1[%c0, %c0_0, %c0_1, %c0_2] : memref<2x8x8x32xbf16, #tpu.memory_space<vmem>>, vector<2x8x8x32xbf16>
    %c0_3 = arith.constant 0 : index
    %c0_4 = arith.constant 0 : index
    %1 = vector.load %arg2[%c0_3, %c0_4] : memref<32x32xbf16, #tpu.memory_space<vmem>>, vector<32x32xbf16>
    %c0_5 = arith.constant 0 : index
    %c0_6 = arith.constant 0 : index
    %2 = vector.load %arg3[%c0_5, %c0_6] : memref<1x32xf32, #tpu.memory_space<vmem>>, vector<1x32xf32>
    %c0_7 = arith.constant 0 : index
    %c0_8 = arith.constant 0 : index
    %3 = vector.load %arg4[%c0_7, %c0_8] : memref<64x128xbf16, #tpu.memory_space<vmem>>, vector<64x128xbf16>
    %c0_9 = arith.constant 0 : index
    %c0_10 = arith.constant 0 : index
    %4 = vector.load %arg5[%c0_9, %c0_10] : memref<1x128xf32, #tpu.memory_space<vmem>>, vector<1x128xf32>
    %5 = vector.shape_cast %0 : vector<2x8x8x32xbf16> to vector<128x32xbf16>
    %cst = arith.constant dense<0.000000e+00> : vector<128x32xf32>
    %6 = tpu.matmul %5, %1, %cst {dimension_numbers = #tpu.dot_dimension_numbers<[1], [0], [0], [1], [0, 0, 1, 1], [], []>} : vector<128x32xbf16>, vector<32x32xbf16>, vector<128x32xf32> -> vector<128x32xf32>
    %7 = vector.broadcast %2 : vector<1x32xf32> to vector<128x32xf32>
    %8 = arith.addf %6, %7 : vector<128x32xf32>
    %9 = math.tanh %8 : vector<128x32xf32>
    %10 = arith.truncf %9 : vector<128x32xf32> to vector<128x32xbf16>
    %11 = vector.extract_strided_slice %3 {offsets = [0, 0], sizes = [32, 128], strides = [1, 1]} : vector<64x128xbf16> to vector<32x128xbf16>
    %cst_11 = arith.constant dense<0.000000e+00> : vector<128x128xf32>
    %12 = tpu.matmul %10, %11, %cst_11 {dimension_numbers = #tpu.dot_dimension_numbers<[1], [0], [0], [1], [0, 0, 1, 1], [], []>} : vector<128x32xbf16>, vector<32x128xbf16>, vector<128x128xf32> -> vector<128x128xf32>
    %13 = vector.shape_cast %12 : vector<128x128xf32> to vector<16x8x128xf32>
    %14 = vector.extract_strided_slice %13 {offsets = [0, 0, 0], sizes = [16, 7, 128], strides = [1, 1, 1]} : vector<16x8x128xf32> to vector<16x7x128xf32>
    %15 = vector.extract_strided_slice %3 {offsets = [32, 0], sizes = [32, 128], strides = [1, 1]} : vector<64x128xbf16> to vector<32x128xbf16>
    %cst_12 = arith.constant dense<0.000000e+00> : vector<128x128xf32>
    %16 = tpu.matmul %10, %15, %cst_12 {dimension_numbers = #tpu.dot_dimension_numbers<[1], [0], [0], [1], [0, 0, 1, 1], [], []>} : vector<128x32xbf16>, vector<32x128xbf16>, vector<128x128xf32> -> vector<128x128xf32>
    %17 = vector.shape_cast %16 : vector<128x128xf32> to vector<16x8x128xf32>
    %18 = vector.extract_strided_slice %17 {offsets = [0, 1, 0], sizes = [16, 7, 128], strides = [1, 1, 1]} : vector<16x8x128xf32> to vector<16x7x128xf32>
    %19 = arith.addf %14, %18 : vector<16x7x128xf32>
    %20 = vector.shape_cast %4 : vector<1x128xf32> to vector<1x1x128xf32>
    %21 = vector.broadcast %20 : vector<1x1x128xf32> to vector<16x7x128xf32>
    %22 = arith.addf %19, %21 : vector<16x7x128xf32>
    %cst_13 = arith.constant dense<0xFF800000> : vector<16x128xf32>
    %23 = vector.multi_reduction <maximumf>, %22, %cst_13 [1] : vector<16x7x128xf32> to vector<16x128xf32>
    %24 = math.tanh %23 : vector<16x128xf32>
    %25 = vector.extract_strided_slice %24 {offsets = [0, 0], sizes = [8, 128], strides = [1, 1]} : vector<16x128xf32> to vector<8x128xf32>
    %26 = vector.extract_strided_slice %24 {offsets = [8, 0], sizes = [8, 128], strides = [1, 1]} : vector<16x128xf32> to vector<8x128xf32>
    %27 = arith.mulf %25, %26 : vector<8x128xf32>
    %cst_14 = arith.constant dense<0.000000e+00> : vector<8xf32>
    %28 = vector.multi_reduction <add>, %27, %cst_14 [1] : vector<8x128xf32> to vector<8xf32>
    %29 = vector.shape_cast %28 : vector<8xf32> to vector<8x1xf32>
    %30 = arith.mulf %25, %25 : vector<8x128xf32>
    %cst_15 = arith.constant dense<0.000000e+00> : vector<8xf32>
    %31 = vector.multi_reduction <add>, %30, %cst_15 [1] : vector<8x128xf32> to vector<8xf32>
    %32 = vector.shape_cast %31 : vector<8xf32> to vector<8x1xf32>
    %33 = arith.mulf %26, %26 : vector<8x128xf32>
    %cst_16 = arith.constant dense<0.000000e+00> : vector<8xf32>
    %34 = vector.multi_reduction <add>, %33, %cst_16 [1] : vector<8x128xf32> to vector<8xf32>
    %35 = vector.shape_cast %34 : vector<8xf32> to vector<8x1xf32>
    %cst_17 = arith.constant 1.000000e-16 : f32
    %36 = vector.broadcast %cst_17 : f32 to vector<8x1xf32>
    %37 = arith.maximumf %32, %36 : vector<8x1xf32>
    %38 = math.rsqrt %37 : vector<8x1xf32>
    %cst_18 = arith.constant 1.000000e-16 : f32
    %39 = vector.broadcast %cst_18 : f32 to vector<8x1xf32>
    %40 = arith.maximumf %35, %39 : vector<8x1xf32>
    %41 = math.rsqrt %40 : vector<8x1xf32>
    %42 = arith.mulf %38, %41 : vector<8x1xf32>
    %43 = arith.mulf %29, %42 : vector<8x1xf32>
    %c0_19 = arith.constant 0 : index
    %c0_20 = arith.constant 0 : index
    %44 = vector.load %arg6[%c0_19, %c0_20] : memref<8x1xf32, #tpu.memory_space<vmem>>, vector<8x1xf32>
    tpu.vector_store %arg6[%c0_19, %c0_20], %43 {strides = array<i32>} : memref<8x1xf32, #tpu.memory_space<vmem>>, vector<8x1xf32>,
    return
  }
  func.func @transform_0(%arg0: i32) -> (i32, i32, i32, i32) {
    %c0_i32 = arith.constant 0 : i32
    %c0_i32_0 = arith.constant 0 : i32
    %c0_i32_1 = arith.constant 0 : i32
    %c0_i32_2 = arith.constant 0 : i32
    return %c0_i32, %arg0, %c0_i32_0, %c0_i32_1 : i32, i32, i32, i32
  }
  func.func @transform_1(%arg0: i32) -> (i32, i32) {
    %c0_i32 = arith.constant 0 : i32
    %c0_i32_0 = arith.constant 0 : i32
    %c0_i32_1 = arith.constant 0 : i32
    return %c0_i32, %c0_i32_0 : i32, i32
  }
  func.func @transform_2(%arg0: i32) -> (i32, i32) {
    %c0_i32 = arith.constant 0 : i32
    %c0_i32_0 = arith.constant 0 : i32
    %c0_i32_1 = arith.constant 0 : i32
    return %c0_i32, %c0_i32_0 : i32, i32
  }
  func.func @transform_3(%arg0: i32) -> (i32, i32) {
    %c0_i32 = arith.constant 0 : i32
    %c0_i32_0 = arith.constant 0 : i32
    %c0_i32_1 = arith.constant 0 : i32
    return %c0_i32, %c0_i32_0 : i32, i32
  }
  func.func @transform_4(%arg0: i32) -> (i32, i32) {
    %c0_i32 = arith.constant 0 : i32
    %c0_i32_0 = arith.constant 0 : i32
    %c0_i32_1 = arith.constant 0 : i32
    return %c0_i32, %c0_i32_0 : i32, i32
  }
  func.func @transform_5(%arg0: i32) -> (i32, i32) {
    %c0_i32 = arith.constant 0 : i32
    %c0_i32_0 = arith.constant 0 : i32
    return %arg0, %c0_i32 : i32, i32
  }
}

</mosaic_0001>

<llo_original>
// kernel: tpu_custom_call.1
$region0: #{tpu_custom_call.1}
  #allocation0 [shape = 'u32[]', space=smem, size = 0x4, offset = 0x4, fixed_abs, tag = 'smem constant byte address 0x4 - core index']
  #allocation1 [shape = 'u32[144,128]{1,0:T(1,128)}', space=vmem, size = 0x12000, scoped, tag = 'internal scratch']
  #allocation7 [shape = 's32[]', space=sflag, size = 0x4, offset = 0, fixed_abs, tag = 'sflag constant byte address 0x0 - dummy sync flag']
  %s0 = inlined_call_operand.hbm [shape: bf16[2,16,8,32], index: 0, kind: input, shape index: {}]
  %s1 = inlined_call_operand.hbm [shape: bf16[32,32], index: 1, kind: input, shape index: {}]
  %s2 = inlined_call_operand.vmem [shape: f32[1,32], index: 2, kind: input, shape index: {}]
  %s3 = inlined_call_operand.hbm [shape: bf16[64,128], index: 3, kind: input, shape index: {}]
  %s4 = inlined_call_operand.vmem [shape: f32[1,128], index: 4, kind: input, shape index: {}]
  %s5 = inlined_call_operand.vmem [shape: f32[16,1], index: 5, kind: output, shape index: {}]
  %s6 = sld [smem:[#allocation0]]
  $region65: #{tpu_custom_call.1} parent=0
    _
  %s8 = ssub.s32 1, %s6
  %s9 = scalar_select 0, %s8, %s6
  $region1: #{tpu_custom_call.1} parent=0
    #allocation2 [shape = 'u8[65536]{0}', space=vmem, size = 0x10000, scoped, tag = 'input window, operand 0']
    #allocation3 [shape = 's32[2]{0}', space=sflag, size = 0x8, scoped, tag = 'scoped memory for tpu_custom_call.1']
    #allocation4 [shape = 'u8[8192]{0}', space=vmem, size = 0x2000, scoped, tag = 'input window, operand 1, single buffered']
    #allocation5 [shape = 's32[1]{0}', space=sflag, size = 0x4, scoped, tag = 'scoped memory for tpu_custom_call.1']
    #allocation6 [shape = 'u8[16384]{0}', space=vmem, size = 0x4000, scoped, tag = 'input window, operand 3, single buffered']
    %10 = vsyncpa [#allocation3], 0
    %s11 = scalar_lea.sflag [#allocation3], 1
    %12 = vsyncpa %s11, 0
    %13 = vsyncpa [#allocation5], 0
    loop: start=0, step=1, limit=4
    $region2: #{tpu_custom_call.1} parent=1 // loop_pre_header
      _
    $region3: #{tpu_custom_call.1} parent=1 // loop_header
      %s15 = sphi 0, %s19
      %p16 = scmp.ge.s32.totalorder %s15, 4
      %s25 = sphi 0, %s27
      %s28 = sphi 0, %s25
      %s29 = sphi 0, %s28
      %s45 = sphi 0, %s29
      %s49 = sphi 0, %s49
      %s51 = sphi 0, %s49
      %s52 = sphi 0, %s51
      %s66 = sphi 0, %s52
      %s70 = sphi 0, %s70
      %s72 = sphi 0, %s70
      %s73 = sphi 0, %s72
      %s87 = sphi 0, %s73
      %s91 = sphi 0, %s91
      %s93 = sphi 0, %s91
      %s94 = sphi 0, %s93
      %s108 = sphi 0, %s94
      %s112 = sphi 0, %s112
      %s114 = sphi 0, %s112
      %s115 = sphi 0, %s114
      %s129 = sphi 0, %s115
      %s135 = sphi 0, %s137
      %s138 = sphi 0, %s135
      %s139 = sphi 0, %s138
      %s155 = sphi 0, %s139
    $region4: #{tpu_custom_call.1} parent=1 // loop_header_branch
      %18 = sbr.rel (%p16) target = $region8
    $region5: #{tpu_custom_call.1} parent=1 // loop_body
      %s20 = ssub.s32 %s15, 1
      %s21 = ssub.s32 %s15, 2
      %s22 = sadd.s32 %s15, 1
      %s23 = ssub.s32 %s15, %s22
      %p24 = scmp.eq.s32.totalorder %s23, 0
      %s26 = sadd.s32 %s25, 1
      %s27 = scalar_select %p24, %s25, %s26
      %p30 = pneg %p24
      %p31 = scmp.eq.s32.totalorder %s15, 1
      %p32 = por %p30, %p31
      %p33 = scmp.ne.s32.totalorder %s25, %s28
      %p34 = scmp.eq.s32.totalorder %s15, 0
      %p35 = por %p33, %p34
      %p36 = scmp.ne.s32.totalorder %s25, %s28
      %p37 = scmp.eq.s32.totalorder %s20, 1
      %p38 = por %p36, %p37
      %p39 = scmp.ne.s32.totalorder %s28, %s29
      %p40 = scmp.eq.s32.totalorder %s20, 0
      %p41 = por %p39, %p40
      %p42 = scmp.ne.s32.totalorder %s28, %s29
      %p43 = scmp.eq.s32.totalorder %s21, 1
      %p44 = por %p42, %p43
      %p46 = scmp.ne.s32.totalorder %s29, %s45
      %p47 = scmp.eq.s32.totalorder %s21, 0
      %p48 = por %p46, %p47
      %s50 = sadd.s32 %s49, 1
      %p53 = scmp.eq.s32.totalorder %s15, 1
      %p54 = scmp.ne.s32.totalorder %s49, %s51
      %p55 = scmp.eq.s32.totalorder %s15, 0
      %p56 = por %p54, %p55
      %p57 = scmp.ne.s32.totalorder %s49, %s51
      %p58 = scmp.eq.s32.totalorder %s20, 1
      %p59 = por %p57, %p58
      %p60 = scmp.ne.s32.totalorder %s51, %s52
      %p61 = scmp.eq.s32.totalorder %s20, 0
      %p62 = por %p60, %p61
      %p63 = scmp.ne.s32.totalorder %s51, %s52
      %p64 = scmp.eq.s32.totalorder %s21, 1
      %p65 = por %p63, %p64
      %p67 = scmp.ne.s32.totalorder %s52, %s66
      %p68 = scmp.eq.s32.totalorder %s21, 0
      %p69 = por %p67, %p68
      %s71 = sadd.s32 %s70, 1
      %p74 = scmp.eq.s32.totalorder %s15, 1
      %p75 = scmp.ne.s32.totalorder %s70, %s72
      %p76 = scmp.eq.s32.totalorder %s15, 0
      %p77 = por %p75, %p76
      %p78 = scmp.ne.s32.totalorder %s70, %s72
      %p79 = scmp.eq.s32.totalorder %s20, 1
      %p80 = por %p78, %p79
      %p81 = scmp.ne.s32.totalorder %s72, %s73
      %p82 = scmp.eq.s32.totalorder %s20, 0
      %p83 = por %p81, %p82
      %p84 = scmp.ne.s32.totalorder %s72, %s73
      %p85 = scmp.eq.s32.totalorder %s21, 1
      %p86 = por %p84, %p85
      %p88 = scmp.ne.s32.totalorder %s73, %s87
      %p89 = scmp.eq.s32.totalorder %s21, 0
      %p90 = por %p88, %p89
      %s92 = sadd.s32 %s91, 1
      %p95 = scmp.eq.s32.totalorder %s15, 1
      %p96 = scmp.ne.s32.totalorder %s91, %s93
      %p97 = scmp.eq.s32.totalorder %s15, 0
      %p98 = por %p96, %p97
      %p99 = scmp.ne.s32.totalorder %s91, %s93
      %p100 = scmp.eq.s32.totalorder %s20, 1
      %p101 = por %p99, %p100
      %p102 = scmp.ne.s32.totalorder %s93, %s94
      %p103 = scmp.eq.s32.totalorder %s20, 0
      %p104 = por %p102, %p103
      %p105 = scmp.ne.s32.totalorder %s93, %s94
      %p106 = scmp.eq.s32.totalorder %s21, 1
      %p107 = por %p105, %p106
      %p109 = scmp.ne.s32.totalorder %s94, %s108
      %p110 = scmp.eq.s32.totalorder %s21, 0
      %p111 = por %p109, %p110
      %s113 = sadd.s32 %s112, 1
      %p116 = scmp.eq.s32.totalorder %s15, 1
      %p117 = scmp.ne.s32.totalorder %s112, %s114
      %p118 = scmp.eq.s32.totalorder %s15, 0
      %p119 = por %p117, %p118
      %p120 = scmp.ne.s32.totalorder %s112, %s114
      %p121 = scmp.eq.s32.totalorder %s20, 1
      %p122 = por %p120, %p121
      %p123 = scmp.ne.s32.totalorder %s114, %s115
      %p124 = scmp.eq.s32.totalorder %s20, 0
      %p125 = por %p123, %p124
      %p126 = scmp.ne.s32.totalorder %s114, %s115
      %p127 = scmp.eq.s32.totalorder %s21, 1
      %p128 = por %p126, %p127
      %p130 = scmp.ne.s32.totalorder %s115, %s129
      %p131 = scmp.eq.s32.totalorder %s21, 0
      %p132 = por %p130, %p131
      %s133 = ssub.s32 %s15, %s22
      %p134 = scmp.eq.s32.totalorder %s133, 0
      %s136 = sadd.s32 %s135, 1
      %s137 = scalar_select %p134, %s135, %s136
      %p140 = pneg %p134
      %p141 = scmp.eq.s32.totalorder %s15, 1
      %p142 = por %p140, %p141
      %p143 = scmp.ne.s32.totalorder %s135, %s138
      %p144 = scmp.eq.s32.totalorder %s15, 0
      %p145 = por %p143, %p144
      %p146 = scmp.ne.s32.totalorder %s135, %s138
      %p147 = scmp.eq.s32.totalorder %s20, 1
      %p148 = por %p146, %p147
      %p149 = scmp.ne.s32.totalorder %s138, %s139
      %p150 = scmp.eq.s32.totalorder %s20, 0
      %p151 = por %p149, %p150
      %p152 = scmp.ne.s32.totalorder %s138, %s139
      %p153 = scmp.eq.s32.totalorder %s21, 1
      %p154 = por %p152, %p153
      %p156 = scmp.ne.s32.totalorder %s139, %s155
      %p157 = scmp.eq.s32.totalorder %s21, 0
      %p158 = por %p156, %p157
      %p159 = scmp.le.s32.totalorder 1, %s15
      %p160 = scmp.lt.s32.totalorder %s15, 3
      %p161 = pnand %p159, %p160
      %p162 = pneg %p161
      // Predicated region
      $region9: #{tpu_custom_call.1} parent=5 // pred_check
        _
      $region10: #{tpu_custom_call.1} parent=5 // pred_check_branch
        %164 = sbr.rel (%p161) target = $region12
      $region11: #{tpu_custom_call.1} parent=5 // pred_region
        %s165 = ssub.s32 %s15, 1
        // Predicated region
        $region13: #{tpu_custom_call.1} parent=11 // pred_check
          %p166 = pneg %p62
        $region14: #{tpu_custom_call.1} parent=11 // pred_check_branch
          %168 = sbr.rel (%p166) target = $region16
        $region15: #{tpu_custom_call.1} parent=11 // pred_region
          %s170 = ssub.s32 256, 256
          %171 = vsyncadd [#allocation5], %s170
          %s172 = sshll.u32 [#allocation4], 4
          %s173 = int_to_ptr.vmem [resolvable:$true] %s172
          %178 = dma.hbm_to_vmem [thread:$0]  %s1, 256, %s173, [#allocation5], 64, 64, 4
        $region16: #{tpu_custom_call.1} parent=11 // pred_fallthru
          _
        // Predicated region
        $region17: #{tpu_custom_call.1} parent=11 // pred_check
          %p179 = pneg %p83
        $region18: #{tpu_custom_call.1} parent=11 // pred_check_branch
          %181 = sbr.rel (%p179) target = $region20
        $region19: #{tpu_custom_call.1} parent=11 // pred_region
          _
        $region20: #{tpu_custom_call.1} parent=11 // pred_fallthru
          _
        // Predicated region
        $region21: #{tpu_custom_call.1} parent=11 // pred_check
          %p182 = pneg %p104
        $region22: #{tpu_custom_call.1} parent=11 // pred_check_branch
          %184 = sbr.rel (%p182) target = $region24
        $region23: #{tpu_custom_call.1} parent=11 // pred_region
          %s186 = ssub.s32 512, 512
          %187 = vsyncadd [#allocation5], %s186
          %s188 = sshll.u32 [#allocation6], 4
          %s189 = int_to_ptr.vmem [resolvable:$true] %s188
          %194 = dma.hbm_to_vmem [thread:$0]  %s3, 512, %s189, [#allocation5], 64, 64, 4
        $region24: #{tpu_custom_call.1} parent=11 // pred_fallthru
          _
        // Predicated region
        $region25: #{tpu_custom_call.1} parent=11 // pred_check
          %p195 = pneg %p125
        $region26: #{tpu_custom_call.1} parent=11 // pred_check_branch
          %197 = sbr.rel (%p195) target = $region28
        $region27: #{tpu_custom_call.1} parent=11 // pred_region
          _
        $region28: #{tpu_custom_call.1} parent=11 // pred_fallthru
          _
      $region12: #{tpu_custom_call.1} parent=5 // pred_fallthru
        _
      %p198 = scmp.lt.s32.totalorder %s15, 2
      // Predicated region
      $region29: #{tpu_custom_call.1} parent=5 // pred_check
        %p199 = pneg %p198
      $region30: #{tpu_custom_call.1} parent=5 // pred_check_branch
        %201 = sbr.rel (%p199) target = $region32
      $region31: #{tpu_custom_call.1} parent=5 // pred_region
        // Predicated region
        $region33: #{tpu_custom_call.1} parent=31 // pred_check
          %p202 = pneg %p35
        $region34: #{tpu_custom_call.1} parent=31 // pred_check_branch
          %204 = sbr.rel (%p202) target = $region36
        $region35: #{tpu_custom_call.1} parent=31 // pred_region
          #allocation8 [shape = 'u32[6]{0}', space=smem, size = 0x18, scoped, tag = 'DMA stride descriptor']
          %s205 = sand.u32 %s25, 1
          %s206 = scalar_lea.sflag [#allocation3], %s205
          %s207 = sand.u32 %s25, 1
          %s208 = smul.addr %s207, 64
          %s209 = scalar_lea.vmem [#allocation2], %s208
          %s210 = smul.u32 8, %s15
          %s212 = ssub.s32 1024, 1024
          %213 = vsyncadd %s206, %s212
          %s214 = smul.addr %s210, 64
          %s215 = scalar_lea.hbm %s0, %s214
          %s217 = sshll.u32 1, 14
          %s218 = sxor.u32 4294967295, %s217
          %s220 = sld [smem:[#allocation0]]
          %s221 = sadd.s32 2, %s220
          %s223 = sshll.u32 7, 26
          %s224 = sxor.u32 4294967295, %s223
          %s225 = sand.u32 0, %s224
          %s226 = sshll.u32 %s221, 26
          %s227 = sor.u32 %s225, %s226
          %s228 = sshll.u32 %s209, 4
          %s229 = int_to_ptr.vmem [resolvable:$true] %s228
          %235 = sst [smem:[#allocation8]] 1024
          %s236 = scalar_lea.smem [#allocation8], 1
          %237 = sst [smem:[%s236]] 512
          %s238 = scalar_lea.smem [#allocation8], 2
          %239 = sst [smem:[%s238]] 8
          %s240 = scalar_lea.smem [#allocation8], 3
          %241 = sst [smem:[%s240]] 64
          %s242 = scalar_lea.smem [#allocation8], 4
          %243 = sst [smem:[%s242]] 64
          %s244 = scalar_lea.smem [#allocation8], 5
          %245 = sst [smem:[%s244]] 4
          %247 = dma.general %s215, 1024, %s229, %s206, [#allocation7], [#allocation8], %s227, 0
        $region36: #{tpu_custom_call.1} parent=31 // pred_fallthru
          _
      $region32: #{tpu_custom_call.1} parent=5 // pred_fallthru
        _
      %p248 = scmp.le.s32.totalorder 1, %s15
      %p249 = scmp.lt.s32.totalorder %s15, 3
      %p250 = pnand %p248, %p249
      %p251 = pneg %p250
      // Predicated region
      $region37: #{tpu_custom_call.1} parent=5 // pred_check
        _
      $region38: #{tpu_custom_call.1} parent=5 // pred_check_branch
        %253 = sbr.rel (%p250) target = $region40
      $region39: #{tpu_custom_call.1} parent=5 // pred_region
        %s254 = ssub.s32 %s15, 1
        %s255 = sand.u32 %s28, 1
        %s256 = scalar_lea.sflag [#allocation3], %s255
        %s257 = sand.u32 %s28, 1
        %s258 = smul.addr %s257, 64
        %s259 = scalar_lea.vmem [#allocation2], %s258
        // Predicated region
        $region41: #{tpu_custom_call.1} parent=39 // pred_check
          %p260 = pneg %p41
        $region42: #{tpu_custom_call.1} parent=39 // pred_check_branch
          %262 = sbr.rel (%p260) target = $region44
        $region43: #{tpu_custom_call.1} parent=39 // pred_region
          %263 = dma.done %s256, 1024
        $region44: #{tpu_custom_call.1} parent=39 // pred_fallthru
          _
        // Predicated region
        $region45: #{tpu_custom_call.1} parent=39 // pred_check
          %p264 = pneg %p62
        $region46: #{tpu_custom_call.1} parent=39 // pred_check_branch
          %266 = sbr.rel (%p264) target = $region48
        $region47: #{tpu_custom_call.1} parent=39 // pred_region
          %267 = dma.done [#allocation5], 256
        $region48: #{tpu_custom_call.1} parent=39 // pred_fallthru
          _
        // Predicated region
        $region49: #{tpu_custom_call.1} parent=39 // pred_check
          %p268 = pneg %p104
        $region50: #{tpu_custom_call.1} parent=39 // pred_check_branch
          %270 = sbr.rel (%p268) target = $region52
        $region51: #{tpu_custom_call.1} parent=39 // pred_region
          %271 = dma.done [#allocation5], 512
        $region52: #{tpu_custom_call.1} parent=39 // pred_fallthru
          _
        %s272 = sand.u32 %s28, 1
        %s273 = scalar_lea.sflag [#allocation3], %s272
        %s274 = sand.u32 %s28, 1
        %s275 = smul.addr %s274, 64
        %s276 = scalar_lea.vmem [#allocation2], %s275
        %p277 = pneg %p41
        %p278 = pneg %p38
        %p279 = pneg %p62
        %p280 = pneg %p59
        %p281 = pneg %p83
        %p282 = pneg %p80
        %p283 = pneg %p104
        %p284 = pneg %p101
        %p285 = pneg %p125
        %p286 = pneg %p122
        %p287 = pneg %p151
        %p288 = pneg %p148
        %p289 = scmp.lt.s32.totalorder %s20, 1
        %s290 = scalar_select %p289, %s20, 1
        %s291 = smul.addr %s290, 8
        %s292 = scalar_lea.vmem %s5, %s291
        %s293 = smul.u32 8, %s20
        %p294 = scmp.lt.s32.totalorder %s20, 1
        %s295 = scalar_select %p294, %s20, 1
        %s296 = smul.addr %s295, 8
        %s297 = scalar_lea.vmem %s5, %s296
        %v299 = vld [vmem:[%s259] sm:$0xf]
        %v300 = vld [vmem:[%s259 + $0x4] sm:$0xf]
        %v301 = vld [vmem:[%s259 + $0x8] sm:$0xf]
        %v302 = vld [vmem:[%s259 + $0xc] sm:$0xf]
        %v303 = vld [vmem:[%s259 + $0x10] sm:$0xf]
        %v304 = vld [vmem:[%s259 + $0x14] sm:$0xf]
        %v305 = vld [vmem:[%s259 + $0x18] sm:$0xf]
        %v306 = vld [vmem:[%s259 + $0x1c] sm:$0xf]
        %v307 = vld [vmem:[%s259 + $0x20] sm:$0xf]
        %v308 = vld [vmem:[%s259 + $0x24] sm:$0xf]
        %v309 = vld [vmem:[%s259 + $0x28] sm:$0xf]
        %v310 = vld [vmem:[%s259 + $0x2c] sm:$0xf]
        %v311 = vld [vmem:[%s259 + $0x30] sm:$0xf]
        %v312 = vld [vmem:[%s259 + $0x34] sm:$0xf]
        %v313 = vld [vmem:[%s259 + $0x38] sm:$0xf]
        %v314 = vld [vmem:[%s259 + $0x3c] sm:$0xf]
        %v315 = vld [vmem:[#allocation4] sm:$0xf]
        %v316 = vld [vmem:[#allocation4 + $0x4] sm:$0xf]
        %v317 = vld [vmem:[#allocation4 + $0x8] sm:$0xf]
        %v318 = vld [vmem:[#allocation4 + $0xc] sm:$0xf]
        %v319 = vld [vmem:[%s2] sm:$0x1]
        %v320 = vld [vmem:[#allocation6] sm:$0xf]
        %v321 = vld [vmem:[#allocation6 + $0x4] sm:$0xf]
        %v322 = vld [vmem:[#allocation6 + $0x8] sm:$0xf]
        %v323 = vld [vmem:[#allocation6 + $0xc] sm:$0xf]
        %v324 = vld [vmem:[#allocation6 + $0x10] sm:$0xf]
        %v325 = vld [vmem:[#allocation6 + $0x14] sm:$0xf]
        %v326 = vld [vmem:[#allocation6 + $0x18] sm:$0xf]
        %v327 = vld [vmem:[#allocation6 + $0x1c] sm:$0xf]
        %v328 = vld [vmem:[%s4] sm:$0x1]
        %v330 = vlaneseq
        %v331 = vshrl.u32 %v330, 7
        %v332 = vsub.s32 0, %v331
        %v333 = vrot.slane %v319, %v332
        %v351 = vunpack.c.l.b16 %v299
        %v352 = vunpack.c.l.b16 %v300
        %v353 = vunpack.c.l.b16 %v301
        %v354 = vunpack.c.l.b16 %v302
        %v355 = vunpack.c.l.b16 %v303
        %v356 = vunpack.c.l.b16 %v304
        %v357 = vunpack.c.l.b16 %v305
        %v358 = vunpack.c.l.b16 %v306
        %v359 = vunpack.c.l.b16 %v307
        %v360 = vunpack.c.l.b16 %v308
        %v361 = vunpack.c.l.b16 %v309
        %v362 = vunpack.c.l.b16 %v310
        %v363 = vunpack.c.l.b16 %v311
        %v364 = vunpack.c.l.b16 %v312
        %v365 = vunpack.c.l.b16 %v313
        %v366 = vunpack.c.l.b16 %v314
        %v367 = vpack.c.b16 %v352, %v351
        %v368 = vpack.c.b16 %v354, %v353
        %v369 = vpack.c.b16 %v356, %v355
        %v370 = vpack.c.b16 %v358, %v357
        %v371 = vpack.c.b16 %v360, %v359
        %v372 = vpack.c.b16 %v362, %v361
        %v373 = vpack.c.b16 %v364, %v363
        %v374 = vpack.c.b16 %v366, %v365
        %v379 = vunpack.c.l.b16 %v315
        %v380 = vunpack.c.l.b16 %v316
        %v381 = vunpack.c.l.b16 %v317
        %v382 = vunpack.c.l.b16 %v318
        %v383 = vpack.c.b16 %v380, %v379
        %v384 = vpack.c.b16 %v382, %v381
        %vm387 = vcmask 261120
        %v389 = vsel %vm387, %v367, 0
        %v392 = vsel %vm387, %v368, 0
        %v395 = vsel %vm387, %v369, 0
        %v398 = vsel %vm387, %v370, 0
        %v401 = vsel %vm387, %v371, 0
        %v404 = vsel %vm387, %v372, 0
        %v407 = vsel %vm387, %v373, 0
        %v410 = vsel %vm387, %v374, 0
        %412 = vmatprep.subr.bf16.mxu0 0
        %413 = vmatpush1.bf16.msra.mxu0 %v383
        %414 = vmatprep.subr.bf16.mxu0 0
        %415 = vmatpush1.bf16.msra.mxu0 %v384
        %416 = vmatprep.subr.bf16.mxu0 0
        %417 = vmatpush1.bf16.msra.mxu0 0
        %418 = vmatprep.subr.bf16.mxu0 0
        %419 = vmatpush1.bf16.msra.mxu0 0
        %420 = vmatprep.subr.bf16.mxu0 0
        %421 = vmatpush1.bf16.msra.mxu0 0
        %422 = vmatprep.subr.bf16.mxu0 0
        %423 = vmatpush1.bf16.msra.mxu0 0
        %424 = vmatprep.subr.bf16.mxu0 0
        %425 = vmatpush1.bf16.msra.mxu0 0
        %426 = vmatprep.subr.bf16.mxu0 0
        %427 = vmatpush1.bf16.msra.mxu0 0
        %428 = vmatprep.subr.bf16.mxu0 0
        %429 = vmatpush1.bf16.msra.mxu0 0
        %430 = vmatprep.subr.bf16.mxu0 0
        %431 = vmatpush1.bf16.msra.mxu0 0
        %432 = vmatprep.subr.bf16.mxu0 0
        %433 = vmatpush1.bf16.msra.mxu0 0
        %434 = vmatprep.subr.bf16.mxu0 0
        %435 = vmatpush1.bf16.msra.mxu0 0
        %436 = vmatprep.subr.bf16.mxu0 0
        %437 = vmatpush1.bf16.msra.mxu0 0
        %438 = vmatprep.subr.bf16.mxu0 0
        %439 = vmatpush1.bf16.msra.mxu0 0
        %440 = vmatprep.subr.bf16.mxu0 0
        %441 = vmatpush1.bf16.msra.mxu0 0
        %442 = vmatprep.subr.bf16.mxu0 0
        %443 = vmatpush1.bf16.msra.mxu0 0
        %444 = vmatprep.mubr.bf16.mxu0 0
        %445 = vmatmul.mubr.bf16.gmra.mrb[0].mxu0 %v389
        %v446 = vpop.f32.mrb[0].mxu0
        %v447 = vadd.f32 %v333, %v446
        %v448 = vpop.f32.mrb[0].mxu0
        %v449 = vpop.f32.mrb[0].mxu0
        %v450 = vadd.f32 %v333, %v449
        %v451 = vpop.f32.mrb[0].mxu0
        %452 = vmatprep.mubr.bf16.mxu0 0
        %453 = vmatmul.mubr.bf16.gmra.mrb[0].mxu0 %v392
        %v454 = vpop.f32.mrb[0].mxu0
        %v455 = vadd.f32 %v333, %v454
        %v456 = vpop.f32.mrb[0].mxu0
        %v457 = vpop.f32.mrb[0].mxu0
        %v458 = vadd.f32 %v333, %v457
        %v459 = vpop.f32.mrb[0].mxu0
        %460 = vmatprep.mubr.bf16.mxu0 0
        %461 = vmatmul.mubr.bf16.gmra.mrb[0].mxu0 %v395
        %v462 = vpop.f32.mrb[0].mxu0
        %v463 = vadd.f32 %v333, %v462
        %v464 = vpop.f32.mrb[0].mxu0
        %v465 = vpop.f32.mrb[0].mxu0
        %v466 = vadd.f32 %v333, %v465
        %v467 = vpop.f32.mrb[0].mxu0
        %468 = vmatprep.mubr.bf16.mxu0 0
        %469 = vmatmul.mubr.bf16.gmra.mrb[0].mxu0 %v398
        %v470 = vpop.f32.mrb[0].mxu0
        %v471 = vadd.f32 %v333, %v470
        %v472 = vpop.f32.mrb[0].mxu0
        %v473 = vpop.f32.mrb[0].mxu0
        %v474 = vadd.f32 %v333, %v473
        %v475 = vpop.f32.mrb[0].mxu0
        %476 = vmatprep.mubr.bf16.mxu0 0
        %477 = vmatmul.mubr.bf16.gmra.mrb[0].mxu0 %v401
        %v478 = vpop.f32.mrb[0].mxu0
        %v479 = vadd.f32 %v333, %v478
        %v480 = vpop.f32.mrb[0].mxu0
        %v481 = vpop.f32.mrb[0].mxu0
        %v482 = vadd.f32 %v333, %v481
        %v483 = vpop.f32.mrb[0].mxu0
        %484 = vmatprep.mubr.bf16.mxu0 0
        %485 = vmatmul.mubr.bf16.gmra.mrb[0].mxu0 %v404
        %v486 = vpop.f32.mrb[0].mxu0
        %v487 = vadd.f32 %v333, %v486
        %v488 = vpop.f32.mrb[0].mxu0
        %v489 = vpop.f32.mrb[0].mxu0
        %v490 = vadd.f32 %v333, %v489
        %v491 = vpop.f32.mrb[0].mxu0
        %492 = vmatprep.mubr.bf16.mxu0 0
        %493 = vmatmul.mubr.bf16.gmra.mrb[0].mxu0 %v407
        %v494 = vpop.f32.mrb[0].mxu0
        %v495 = vadd.f32 %v333, %v494
        %v496 = vpop.f32.mrb[0].mxu0
        %v497 = vpop.f32.mrb[0].mxu0
        %v498 = vadd.f32 %v333, %v497
        %v499 = vpop.f32.mrb[0].mxu0
        %500 = vmatprep.mubr.bf16.mxu0 0
        %501 = vmatmul.mubr.bf16.gmra.mrb[0].mxu0 %v410
        %v502 = vpop.f32.mrb[0].mxu0
        %v503 = vadd.f32 %v333, %v502
        %v504 = vpop.f32.mrb[0].mxu0
        %v505 = vpop.f32.mrb[0].mxu0
        %v506 = vadd.f32 %v333, %v505
        %v507 = vpop.f32.mrb[0].mxu0
        %508 = vdwg.mxu0
        %v509 = vtanh.pop %v447
        %v510 = vtanh.pop %v450
        %v511 = vtanh.pop %v455
        %v512 = vtanh.pop %v458
        %v513 = vtanh.pop %v463
        %v514 = vtanh.pop %v466
        %v515 = vtanh.pop %v471
        %v516 = vtanh.pop %v474
        %v517 = vtanh.pop %v479
        %v518 = vtanh.pop %v482
        %v519 = vtanh.pop %v487
        %v520 = vtanh.pop %v490
        %v521 = vtanh.pop %v495
        %v522 = vtanh.pop %v498
        %v523 = vtanh.pop %v503
        %v524 = vtanh.pop %v506
        %v525 = vpack.c.bf16 %v510, %v509
        %v526 = vpack.c.bf16 %v512, %v511
        %v527 = vpack.c.bf16 %v514, %v513
        %v528 = vpack.c.bf16 %v516, %v515
        %v529 = vpack.c.bf16 %v518, %v517
        %v530 = vpack.c.bf16 %v520, %v519
        %v531 = vpack.c.bf16 %v522, %v521
        %v532 = vpack.c.bf16 %v524, %v523
        %v537 = vunpack.c.l.b16 %v320
        %v538 = vunpack.c.l.b16 %v321
        %v539 = vunpack.c.l.b16 %v322
        %v540 = vunpack.c.l.b16 %v323
        %v541 = vpack.c.b16 %v538, %v537
        %v542 = vpack.c.b16 %v540, %v539
        %v546 = vsel %vm387, %v525, 0
        %v549 = vsel %vm387, %v526, 0
        %v552 = vsel %vm387, %v527, 0
        %v555 = vsel %vm387, %v528, 0
        %v558 = vsel %vm387, %v529, 0
        %v561 = vsel %vm387, %v530, 0
        %v564 = vsel %vm387, %v531, 0
        %v567 = vsel %vm387, %v532, 0
        %569 = vmatprep.subr.bf16.mxu0 0
        %570 = vmatpush1.bf16.msra.mxu0 %v541
        %571 = vmatprep.subr.bf16.mxu0 0
        %572 = vmatpush1.bf16.msra.mxu0 %v542
        %573 = vmatprep.subr.bf16.mxu0 0
        %574 = vmatpush1.bf16.msra.mxu0 0
        %575 = vmatprep.subr.bf16.mxu0 0
        %576 = vmatpush1.bf16.msra.mxu0 0
        %577 = vmatprep.subr.bf16.mxu0 0
        %578 = vmatpush1.bf16.msra.mxu0 0
        %579 = vmatprep.subr.bf16.mxu0 0
        %580 = vmatpush1.bf16.msra.mxu0 0
        %581 = vmatprep.subr.bf16.mxu0 0
        %582 = vmatpush1.bf16.msra.mxu0 0
        %583 = vmatprep.subr.bf16.mxu0 0
        %584 = vmatpush1.bf16.msra.mxu0 0
        %585 = vmatprep.subr.bf16.mxu0 0
        %586 = vmatpush1.bf16.msra.mxu0 0
        %587 = vmatprep.subr.bf16.mxu0 0
        %588 = vmatpush1.bf16.msra.mxu0 0
        %589 = vmatprep.subr.bf16.mxu0 0
        %590 = vmatpush1.bf16.msra.mxu0 0
        %591 = vmatprep.subr.bf16.mxu0 0
        %592 = vmatpush1.bf16.msra.mxu0 0
        %593 = vmatprep.subr.bf16.mxu0 0
        %594 = vmatpush1.bf16.msra.mxu0 0
        %595 = vmatprep.subr.bf16.mxu0 0
        %596 = vmatpush1.bf16.msra.mxu0 0
        %597 = vmatprep.subr.bf16.mxu0 0
        %598 = vmatpush1.bf16.msra.mxu0 0
        %599 = vmatprep.subr.bf16.mxu0 0
        %600 = vmatpush1.bf16.msra.mxu0 0
        %601 = vmatprep.mubr.bf16.mxu0 0
        %602 = vmatmul.mubr.bf16.gmra.mrb[0].mxu0 %v546
        %v603 = vpop.f32.mrb[0].mxu0
        %v604 = vadd.f32 0.0, %v603
        %v605 = vpop.f32.mrb[0].mxu0
        %v606 = vpop.f32.mrb[0].mxu0
        %v607 = vadd.f32 0.0, %v606
        %v608 = vpop.f32.mrb[0].mxu0
        %609 = vmatprep.mubr.bf16.mxu0 0
        %610 = vmatmul.mubr.bf16.gmra.mrb[0].mxu0 %v549
        %v611 = vpop.f32.mrb[0].mxu0
        %v612 = vadd.f32 0.0, %v611
        %v613 = vpop.f32.mrb[0].mxu0
        %v614 = vpop.f32.mrb[0].mxu0
        %v615 = vadd.f32 0.0, %v614
        %v616 = vpop.f32.mrb[0].mxu0
        %617 = vmatprep.mubr.bf16.mxu0 0
        %618 = vmatmul.mubr.bf16.gmra.mrb[0].mxu0 %v552
        %v619 = vpop.f32.mrb[0].mxu0
        %v620 = vadd.f32 0.0, %v619
        %v621 = vpop.f32.mrb[0].mxu0
        %v622 = vpop.f32.mrb[0].mxu0
        %v623 = vadd.f32 0.0, %v622
        %v624 = vpop.f32.mrb[0].mxu0
        %625 = vmatprep.mubr.bf16.mxu0 0
        %626 = vmatmul.mubr.bf16.gmra.mrb[0].mxu0 %v555
        %v627 = vpop.f32.mrb[0].mxu0
        %v628 = vadd.f32 0.0, %v627
        %v629 = vpop.f32.mrb[0].mxu0
        %v630 = vpop.f32.mrb[0].mxu0
        %v631 = vadd.f32 0.0, %v630
        %v632 = vpop.f32.mrb[0].mxu0
        %633 = vmatprep.mubr.bf16.mxu0 0
        %634 = vmatmul.mubr.bf16.gmra.mrb[0].mxu0 %v558
        %v635 = vpop.f32.mrb[0].mxu0
        %v636 = vadd.f32 0.0, %v635
        %v637 = vpop.f32.mrb[0].mxu0
        %v638 = vpop.f32.mrb[0].mxu0
        %v639 = vadd.f32 0.0, %v638
        %v640 = vpop.f32.mrb[0].mxu0
        %641 = vmatprep.mubr.bf16.mxu0 0
        %642 = vmatmul.mubr.bf16.gmra.mrb[0].mxu0 %v561
        %v643 = vpop.f32.mrb[0].mxu0
        %v644 = vadd.f32 0.0, %v643
        %v645 = vpop.f32.mrb[0].mxu0
        %v646 = vpop.f32.mrb[0].mxu0
        %v647 = vadd.f32 0.0, %v646
        %v648 = vpop.f32.mrb[0].mxu0
        %649 = vmatprep.mubr.bf16.mxu0 0
        %650 = vmatmul.mubr.bf16.gmra.mrb[0].mxu0 %v564
        %v651 = vpop.f32.mrb[0].mxu0
        %v652 = vadd.f32 0.0, %v651
        %v653 = vpop.f32.mrb[0].mxu0
        %v654 = vpop.f32.mrb[0].mxu0
        %v655 = vadd.f32 0.0, %v654
        %v656 = vpop.f32.mrb[0].mxu0
        %657 = vmatprep.mubr.bf16.mxu0 0
        %658 = vmatmul.mubr.bf16.gmra.mrb[0].mxu0 %v567
        %v659 = vpop.f32.mrb[0].mxu0
        %v660 = vadd.f32 0.0, %v659
        %v661 = vpop.f32.mrb[0].mxu0
        %v662 = vpop.f32.mrb[0].mxu0
        %v663 = vadd.f32 0.0, %v662
        %v664 = vpop.f32.mrb[0].mxu0
        %665 = vdwg.mxu0
        %v670 = vunpack.c.l.b16 %v324
        %v671 = vunpack.c.l.b16 %v325
        %v672 = vunpack.c.l.b16 %v326
        %v673 = vunpack.c.l.b16 %v327
        %v674 = vpack.c.b16 %v671, %v670
        %v675 = vpack.c.b16 %v673, %v672
        %678 = vmatprep.subr.bf16.mxu0 0
        %679 = vmatpush1.bf16.msra.mxu0 %v674
        %680 = vmatprep.subr.bf16.mxu0 0
        %681 = vmatpush1.bf16.msra.mxu0 %v675
        %682 = vmatprep.subr.bf16.mxu0 0
        %683 = vmatpush1.bf16.msra.mxu0 0
        %684 = vmatprep.subr.bf16.mxu0 0
        %685 = vmatpush1.bf16.msra.mxu0 0
        %686 = vmatprep.subr.bf16.mxu0 0
        %687 = vmatpush1.bf16.msra.mxu0 0
        %688 = vmatprep.subr.bf16.mxu0 0
        %689 = vmatpush1.bf16.msra.mxu0 0
        %690 = vmatprep.subr.bf16.mxu0 0
        %691 = vmatpush1.bf16.msra.mxu0 0
        %692 = vmatprep.subr.bf16.mxu0 0
        %693 = vmatpush1.bf16.msra.mxu0 0
        %694 = vmatprep.subr.bf16.mxu0 0
        %695 = vmatpush1.bf16.msra.mxu0 0
        %696 = vmatprep.subr.bf16.mxu0 0
        %697 = vmatpush1.bf16.msra.mxu0 0
        %698 = vmatprep.subr.bf16.mxu0 0
        %699 = vmatpush1.bf16.msra.mxu0 0
        %700 = vmatprep.subr.bf16.mxu0 0
        %701 = vmatpush1.bf16.msra.mxu0 0
        %702 = vmatprep.subr.bf16.mxu0 0
        %703 = vmatpush1.bf16.msra.mxu0 0
        %704 = vmatprep.subr.bf16.mxu0 0
        %705 = vmatpush1.bf16.msra.mxu0 0
        %706 = vmatprep.subr.bf16.mxu0 0
        %707 = vmatpush1.bf16.msra.mxu0 0
        %708 = vmatprep.subr.bf16.mxu0 0
        %709 = vmatpush1.bf16.msra.mxu0 0
        %710 = vmatprep.mubr.bf16.mxu0 0
        %711 = vmatmul.mubr.bf16.gmra.mrb[0].mxu0 %v546
        %v712 = vpop.f32.mrb[0].mxu0
        %v713 = vadd.f32 0.0, %v712
        %v714 = vpop.f32.mrb[0].mxu0
        %v715 = vpop.f32.mrb[0].mxu0
        %v716 = vadd.f32 0.0, %v715
        %v717 = vpop.f32.mrb[0].mxu0
        %718 = vmatprep.mubr.bf16.mxu0 0
        %719 = vmatmul.mubr.bf16.gmra.mrb[0].mxu0 %v549
        %v720 = vpop.f32.mrb[0].mxu0
        %v721 = vadd.f32 0.0, %v720
        %v722 = vpop.f32.mrb[0].mxu0
        %v723 = vpop.f32.mrb[0].mxu0
        %v724 = vadd.f32 0.0, %v723
        %v725 = vpop.f32.mrb[0].mxu0
        %726 = vmatprep.mubr.bf16.mxu0 0
        %727 = vmatmul.mubr.bf16.gmra.mrb[0].mxu0 %v552
        %v728 = vpop.f32.mrb[0].mxu0
        %v729 = vadd.f32 0.0, %v728
        %v730 = vpop.f32.mrb[0].mxu0
        %v731 = vpop.f32.mrb[0].mxu0
        %v732 = vadd.f32 0.0, %v731
        %v733 = vpop.f32.mrb[0].mxu0
        %734 = vmatprep.mubr.bf16.mxu0 0
        %735 = vmatmul.mubr.bf16.gmra.mrb[0].mxu0 %v555
        %v736 = vpop.f32.mrb[0].mxu0
        %v737 = vadd.f32 0.0, %v736
        %v738 = vpop.f32.mrb[0].mxu0
        %v739 = vpop.f32.mrb[0].mxu0
        %v740 = vadd.f32 0.0, %v739
        %v741 = vpop.f32.mrb[0].mxu0
        %742 = vmatprep.mubr.bf16.mxu0 0
        %743 = vmatmul.mubr.bf16.gmra.mrb[0].mxu0 %v558
        %v744 = vpop.f32.mrb[0].mxu0
        %v745 = vadd.f32 0.0, %v744
        %v746 = vpop.f32.mrb[0].mxu0
        %v747 = vpop.f32.mrb[0].mxu0
        %v748 = vadd.f32 0.0, %v747
        %v749 = vpop.f32.mrb[0].mxu0
        %750 = vmatprep.mubr.bf16.mxu0 0
        %751 = vmatmul.mubr.bf16.gmra.mrb[0].mxu0 %v561
        %v752 = vpop.f32.mrb[0].mxu0
        %v753 = vadd.f32 0.0, %v752
        %v754 = vpop.f32.mrb[0].mxu0
        %v755 = vpop.f32.mrb[0].mxu0
        %v756 = vadd.f32 0.0, %v755
        %v757 = vpop.f32.mrb[0].mxu0
        %758 = vmatprep.mubr.bf16.mxu0 0
        %759 = vmatmul.mubr.bf16.gmra.mrb[0].mxu0 %v564
        %v760 = vpop.f32.mrb[0].mxu0
        %v761 = vadd.f32 0.0, %v760
        %v762 = vpop.f32.mrb[0].mxu0
        %v763 = vpop.f32.mrb[0].mxu0
        %v764 = vadd.f32 0.0, %v763
        %v765 = vpop.f32.mrb[0].mxu0
        %766 = vmatprep.mubr.bf16.mxu0 0
        %767 = vmatmul.mubr.bf16.gmra.mrb[0].mxu0 %v567
        %v768 = vpop.f32.mrb[0].mxu0
        %v769 = vadd.f32 0.0, %v768
        %v770 = vpop.f32.mrb[0].mxu0
        %v771 = vpop.f32.mrb[0].mxu0
        %v772 = vadd.f32 0.0, %v771
        %v773 = vpop.f32.mrb[0].mxu0
        %774 = vdwg.mxu0
        %v791 = vrot.slane %v713, 1
        %v792 = vrot.slane %v716, 1
        %v793 = vrot.slane %v721, 1
        %v794 = vrot.slane %v724, 1
        %v795 = vrot.slane %v729, 1
        %v796 = vrot.slane %v732, 1
        %v797 = vrot.slane %v737, 1
        %v798 = vrot.slane %v740, 1
        %v799 = vrot.slane %v745, 1
        %v800 = vrot.slane %v748, 1
        %v801 = vrot.slane %v753, 1
        %v802 = vrot.slane %v756, 1
        %v803 = vrot.slane %v761, 1
        %v804 = vrot.slane %v764, 1
        %v805 = vrot.slane %v769, 1
        %v806 = vrot.slane %v772, 1
        %v823 = vadd.f32 %v604, %v791
        %v824 = vadd.f32 %v607, %v792
        %v825 = vadd.f32 %v612, %v793
        %v826 = vadd.f32 %v615, %v794
        %v827 = vadd.f32 %v620, %v795
        %v828 = vadd.f32 %v623, %v796
        %v829 = vadd.f32 %v628, %v797
        %v830 = vadd.f32 %v631, %v798
        %v831 = vadd.f32 %v636, %v799
        %v832 = vadd.f32 %v639, %v800
        %v833 = vadd.f32 %v644, %v801
        %v834 = vadd.f32 %v647, %v802
        %v835 = vadd.f32 %v652, %v803
        %v836 = vadd.f32 %v655, %v804
        %v837 = vadd.f32 %v660, %v805
        %v838 = vadd.f32 %v663, %v806
        %v840 = vlaneseq
        %v841 = vshrl.u32 %v840, 7
        %v842 = vsub.s32 0, %v841
        %v843 = vrot.slane %v328, %v842
        %v845 = vadd.f32 %v823, %v843
        %v846 = vadd.f32 %v824, %v843
        %v847 = vadd.f32 %v825, %v843
        %v848 = vadd.f32 %v826, %v843
        %v849 = vadd.f32 %v827, %v843
        %v850 = vadd.f32 %v828, %v843
        %v851 = vadd.f32 %v829, %v843
        %v852 = vadd.f32 %v830, %v843
        %v853 = vadd.f32 %v831, %v843
        %v854 = vadd.f32 %v832, %v843
        %v855 = vadd.f32 %v833, %v843
        %v856 = vadd.f32 %v834, %v843
        %v857 = vadd.f32 %v835, %v843
        %v858 = vadd.f32 %v836, %v843
        %v859 = vadd.f32 %v837, %v843
        %v860 = vadd.f32 %v838, %v843
        %vm861 = vcmask 1046528
        %v862 = vsel %vm861, %v845, -inf
        %v863 = vrot.slane %v862, 4
        %v864 = vmax.f32 %v862, %v863
        %v865 = vrot.slane %v864, 2
        %v866 = vmax.f32 %v864, %v865
        %v867 = vrot.slane %v866, 1
        %v868 = vmax.f32 %v866, %v867
        %v869 = vsel %vm861, %v846, -inf
        %v870 = vrot.slane %v869, 4
        %v871 = vmax.f32 %v869, %v870
        %v872 = vrot.slane %v871, 2
        %v873 = vmax.f32 %v871, %v872
        %v874 = vrot.slane %v873, 1
        %v875 = vmax.f32 %v873, %v874
        %v876 = vsel %vm861, %v847, -inf
        %v877 = vrot.slane %v876, 4
        %v878 = vmax.f32 %v876, %v877
        %v879 = vrot.slane %v878, 2
        %v880 = vmax.f32 %v878, %v879
        %v881 = vrot.slane %v880, 1
        %v882 = vmax.f32 %v880, %v881
        %v883 = vsel %vm861, %v848, -inf
        %v884 = vrot.slane %v883, 4
        %v885 = vmax.f32 %v883, %v884
        %v886 = vrot.slane %v885, 2
        %v887 = vmax.f32 %v885, %v886
        %v888 = vrot.slane %v887, 1
        %v889 = vmax.f32 %v887, %v888
        %v890 = vsel %vm861, %v849, -inf
        %v891 = vrot.slane %v890, 4
        %v892 = vmax.f32 %v890, %v891
        %v893 = vrot.slane %v892, 2
        %v894 = vmax.f32 %v892, %v893
        %v895 = vrot.slane %v894, 1
        %v896 = vmax.f32 %v894, %v895
        %v897 = vsel %vm861, %v850, -inf
        %v898 = vrot.slane %v897, 4
        %v899 = vmax.f32 %v897, %v898
        %v900 = vrot.slane %v899, 2
        %v901 = vmax.f32 %v899, %v900
        %v902 = vrot.slane %v901, 1
        %v903 = vmax.f32 %v901, %v902
        %v904 = vsel %vm861, %v851, -inf
        %v905 = vrot.slane %v904, 4
        %v906 = vmax.f32 %v904, %v905
        %v907 = vrot.slane %v906, 2
        %v908 = vmax.f32 %v906, %v907
        %v909 = vrot.slane %v908, 1
        %v910 = vmax.f32 %v908, %v909
        %v911 = vsel %vm861, %v852, -inf
        %v912 = vrot.slane %v911, 4
        %v913 = vmax.f32 %v911, %v912
        %v914 = vrot.slane %v913, 2
        %v915 = vmax.f32 %v913, %v914
        %v916 = vrot.slane %v915, 1
        %v917 = vmax.f32 %v915, %v916
        %v918 = vsel %vm861, %v853, -inf
        %v919 = vrot.slane %v918, 4
        %v920 = vmax.f32 %v918, %v919
        %v921 = vrot.slane %v920, 2
        %v922 = vmax.f32 %v920, %v921
        %v923 = vrot.slane %v922, 1
        %v924 = vmax.f32 %v922, %v923
        %v925 = vsel %vm861, %v854, -inf
        %v926 = vrot.slane %v925, 4
        %v927 = vmax.f32 %v925, %v926
        %v928 = vrot.slane %v927, 2
        %v929 = vmax.f32 %v927, %v928
        %v930 = vrot.slane %v929, 1
        %v931 = vmax.f32 %v929, %v930
        %v932 = vsel %vm861, %v855, -inf
        %v933 = vrot.slane %v932, 4
        %v934 = vmax.f32 %v932, %v933
        %v935 = vrot.slane %v934, 2
        %v936 = vmax.f32 %v934, %v935
        %v937 = vrot.slane %v936, 1
        %v938 = vmax.f32 %v936, %v937
        %v939 = vsel %vm861, %v856, -inf
        %v940 = vrot.slane %v939, 4
        %v941 = vmax.f32 %v939, %v940
        %v942 = vrot.slane %v941, 2
        %v943 = vmax.f32 %v941, %v942
        %v944 = vrot.slane %v943, 1
        %v945 = vmax.f32 %v943, %v944
        %v946 = vsel %vm861, %v857, -inf
        %v947 = vrot.slane %v946, 4
        %v948 = vmax.f32 %v946, %v947
        %v949 = vrot.slane %v948, 2
        %v950 = vmax.f32 %v948, %v949
        %v951 = vrot.slane %v950, 1
        %v952 = vmax.f32 %v950, %v951
        %v953 = vsel %vm861, %v858, -inf
        %v954 = vrot.slane %v953, 4
        %v955 = vmax.f32 %v953, %v954
        %v956 = vrot.slane %v955, 2
        %v957 = vmax.f32 %v955, %v956
        %v958 = vrot.slane %v957, 1
        %v959 = vmax.f32 %v957, %v958
        %v960 = vsel %vm861, %v859, -inf
        %v961 = vrot.slane %v960, 4
        %v962 = vmax.f32 %v960, %v961
        %v963 = vrot.slane %v962, 2
        %v964 = vmax.f32 %v962, %v963
        %v965 = vrot.slane %v964, 1
        %v966 = vmax.f32 %v964, %v965
        %v967 = vsel %vm861, %v860, -inf
        %v968 = vrot.slane %v967, 4
        %v969 = vmax.f32 %v967, %v968
        %v970 = vrot.slane %v969, 2
        %v971 = vmax.f32 %v969, %v970
        %v972 = vrot.slane %v971, 1
        %v973 = vmax.f32 %v971, %v972
        %v974 = vtanh.pop %v868
        %v975 = vtanh.pop %v875
        %v976 = vtanh.pop %v882
        %v977 = vtanh.pop %v889
        %v978 = vtanh.pop %v896
        %v979 = vtanh.pop %v903
        %v980 = vtanh.pop %v910
        %v981 = vtanh.pop %v917
        %v982 = vtanh.pop %v924
        %v983 = vtanh.pop %v931
        %v984 = vtanh.pop %v938
        %v985 = vtanh.pop %v945
        %v986 = vtanh.pop %v952
        %v987 = vtanh.pop %v959
        %v988 = vtanh.pop %v966
        %v989 = vtanh.pop %v973
        %v990 = vmul.f32 %v974, %v982
        %v991 = vmul.f32 %v975, %v983
        %v992 = vmul.f32 %v976, %v984
        %v993 = vmul.f32 %v977, %v985
        %v994 = vmul.f32 %v978, %v986
        %v995 = vmul.f32 %v979, %v987
        %v996 = vmul.f32 %v980, %v988
        %v997 = vmul.f32 %v981, %v989
        %vm1006 = vcmask 1041409
        %v1007 = vsel %vm1006, %v991, %v990
        %vm1008 = vcmask 1042434
        %v1009 = vsel %vm1008, %v992, %v1007
        %vm1010 = vcmask 1043459
        %v1011 = vsel %vm1010, %v993, %v1009
        %vm1012 = vcmask 1044484
        %v1013 = vsel %vm1012, %v994, %v1011
        %vm1014 = vcmask 1045509
        %v1015 = vsel %vm1014, %v995, %v1013
        %vm1016 = vcmask 1046534
        %v1017 = vsel %vm1016, %v996, %v1015
        %vm1018 = vcmask 1047559
        %v1019 = vsel %vm1018, %v997, %v1017
        %1021 = vadd.xlane.f32.xlu0 %v1019
        %v1022 = vpop.xlane.xlu0 %1021
        %v1023 = vmul.f32 %v974, %v974
        %v1024 = vmul.f32 %v975, %v975
        %v1025 = vmul.f32 %v976, %v976
        %v1026 = vmul.f32 %v977, %v977
        %v1027 = vmul.f32 %v978, %v978
        %v1028 = vmul.f32 %v979, %v979
        %v1029 = vmul.f32 %v980, %v980
        %v1030 = vmul.f32 %v981, %v981
        %v1039 = vsel %vm1006, %v1024, %v1023
        %v1040 = vsel %vm1008, %v1025, %v1039
        %v1041 = vsel %vm1010, %v1026, %v1040
        %v1042 = vsel %vm1012, %v1027, %v1041
        %v1043 = vsel %vm1014, %v1028, %v1042
        %v1044 = vsel %vm1016, %v1029, %v1043
        %v1045 = vsel %vm1018, %v1030, %v1044
        %1047 = vadd.xlane.f32.xlu0 %v1045
        %v1048 = vpop.xlane.xlu0 %1047
        %v1049 = vmul.f32 %v982, %v982
        %v1050 = vmul.f32 %v983, %v983
        %v1051 = vmul.f32 %v984, %v984
        %v1052 = vmul.f32 %v985, %v985
        %v1053 = vmul.f32 %v986, %v986
        %v1054 = vmul.f32 %v987, %v987
        %v1055 = vmul.f32 %v988, %v988
        %v1056 = vmul.f32 %v989, %v989
        %v1065 = vsel %vm1006, %v1050, %v1049
        %v1066 = vsel %vm1008, %v1051, %v1065
        %v1067 = vsel %vm1010, %v1052, %v1066
        %v1068 = vsel %vm1012, %v1053, %v1067
        %v1069 = vsel %vm1014, %v1054, %v1068
        %v1070 = vsel %vm1016, %v1055, %v1069
        %v1071 = vsel %vm1018, %v1056, %v1070
        %1073 = vadd.xlane.f32.xlu0 %v1071
        %v1074 = vpop.xlane.xlu0 %1073
        %v1075 = vmax.f32 %v1048, 1e-16
        %v1076 = vrsqrt.pop %v1075
        %v1077 = vmax.f32 %v1074, 1e-16
        %v1078 = vrsqrt.pop %v1077
        %v1079 = vmul.f32 %v1076, %v1078
        %v1080 = vmul.f32 %v1022, %v1079
        %vm1081 = vcmask 7168
        %1082 = vst.msk [vmem:[%s297] sm:$0xff] %vm1081, %v1080
        %p1083 = scmp.lt.s32.totalorder %s20, 1
        %s1084 = scalar_select %p1083, %s20, 1
        %s1085 = smul.addr %s1084, 8
        %s1086 = scalar_lea.vmem %s5, %s1085
        // Predicated region
        $region53: #{tpu_custom_call.1} parent=39 // pred_check
          %p1087 = pneg %p148
        $region54: #{tpu_custom_call.1} parent=39 // pred_check_branch
          %1089 = sbr.rel (%p1087) target = $region56
        $region55: #{tpu_custom_call.1} parent=39 // pred_region
          _
        $region56: #{tpu_custom_call.1} parent=39 // pred_fallthru
          _
      $region40: #{tpu_custom_call.1} parent=5 // pred_fallthru
        _
      %p1090 = scmp.le.s32.totalorder 2, %s15
      // Predicated region
      $region57: #{tpu_custom_call.1} parent=5 // pred_check
        %p1091 = pneg %p1090
      $region58: #{tpu_custom_call.1} parent=5 // pred_check_branch
        %1093 = sbr.rel (%p1091) target = $region60
      $region59: #{tpu_custom_call.1} parent=5 // pred_region
        %s1094 = ssub.s32 %s15, 2
        // Predicated region
        $region61: #{tpu_custom_call.1} parent=59 // pred_check
          %p1095 = pneg %p154
        $region62: #{tpu_custom_call.1} parent=59 // pred_check_branch
          %1097 = sbr.rel (%p1095) target = $region64
        $region63: #{tpu_custom_call.1} parent=59 // pred_region
          %p1098 = scmp.lt.s32.totalorder %s21, 1
          %s1099 = scalar_select %p1098, %s21, 1
          %s1100 = smul.addr %s1099, 8
          %s1101 = scalar_lea.vmem %s5, %s1100
        $region64: #{tpu_custom_call.1} parent=59 // pred_fallthru
          _
      $region60: #{tpu_custom_call.1} parent=5 // pred_fallthru
        _
    $region6: #{tpu_custom_call.1} parent=1 // loop_footer
      %s19 = sadd.s32 1, %s15
    $region7: #{tpu_custom_call.1} parent=1 // loop_footer_branch
      %14 = sbr.rel target = $region3
    $region8: #{tpu_custom_call.1} parent=1 // loop_exit
      _
    %1102 = vsyncpa [#allocation3], 1
    %s1103 = scalar_lea.sflag [#allocation3], 1
    %1104 = vsyncpa %s1103, 1
    %1105 = vsyncpa [#allocation5], 1

</llo_original>
